<compile_context>
chip_gen: v7x
topology: tpu7x:2x2x1
jax: 0.10.0
libtpu: 0.0.40
codegen_flags: <defaults>
</compile_context>

<pallas_src>
import functools

import jax
import jax.numpy as jnp
from jax.experimental import pallas as pl
from jax.experimental.pallas import tpu as pltpu

# JAX equivalents of _TORCH_FUNCTION_FROM_ONNX_TYPE
_JNP_FUNCTION_FROM_ONNX_TYPE = {
    "Abs": jnp.abs,
    "Acos": jnp.arccos,   # TODO(synk): inverse trig may lack a Mosaic lowering on some TPU gens
    "Asin": jnp.arcsin,   # TODO(synk): inverse trig may lack a Mosaic lowering on some TPU gens
    "Atan": jnp.arctan,   # TODO(synk): inverse trig may lack a Mosaic lowering on some TPU gens
    "Cos": jnp.cos,
    "Exp": jnp.exp,
    "Log": jnp.log,
    "Sign": jnp.sign,
    "Sin": jnp.sin,
    "Tan": jnp.tan,
    "Tanh": jnp.tanh,
}

_TRANSCENDENTAL_OPS = frozenset(
    {"Acos", "Asin", "Atan", "Cos", "Exp", "Log", "Sin", "Tan", "Tanh"}
)

_LANES = 128
_SUBLANES = 8


def _unary_kernel(x_ref, o_ref, *, fn, compute_dtype):
    x = x_ref[...]
    if compute_dtype is not None:
        # Folded int->float promotion: the cast happens on the VPU inside the
        # kernel instead of as a separate XLA pass over HBM.
        x = x.astype(compute_dtype)
    o_ref[...] = fn(x).astype(o_ref.dtype)


def _round_up(v, m):
    return ((v + m - 1) // m) * m


@functools.lru_cache(maxsize=None)
def _chip_hints():
    """Return (num_tensorcores_sharing_grid, per-buffer target block bytes)."""
    num_tcs = 1
    target_bytes = 2 * 1024 * 1024  # 4 buffers -> 8 MiB, safe under v5e's 16 MiB scoped default
    try:
        kind = jax.devices()[0].device_kind.lower()
    except Exception:
        return num_tcs, target_bytes
    if "v7" in kind:
        num_tcs, target_bytes = 2, 4 * 1024 * 1024      # 2 TCs, 32 MiB scoped default
    elif "v6" in kind:
        target_bytes = 4 * 1024 * 1024                  # 1 TC, 32 MiB scoped default
    elif "v4" in kind or "v5p" in kind or (
        "v5" in kind and "lite" not in kind and "v5e" not in kind
    ):
        num_tcs = 2                                     # megacore chips
    return num_tcs, target_bytes


def _choose_block_rows(rows, sub, target_rows, num_tcs):
    """Row count per block for the lane-aligned (rows, 128) slab."""
    if rows <= sub:
        return rows                                     # one full-extent block
    if rows <= target_rows:
        if num_tcs >= 2 and rows >= 2 * sub:
            # Two blocks so both TensorCores get work ("parallel" grid axis).
            return _round_up(pl.cdiv(rows, 2), sub)
        return rows                                     # single-TC: one big block, no step overhead
    steps = pl.cdiv(rows, target_rows)
    if num_tcs >= 2 and steps % 2:
        steps += 1                                      # even grid -> balanced across 2 TCs
    return max(sub, _round_up(pl.cdiv(rows, steps), sub))


def _choose_block_elems(n, tile, target_elems):
    """Element count per block for the ragged 1-D path."""
    target = max(tile, (target_elems // tile) * tile)
    if n <= target:
        return n                                        # one full-extent block
    return target


def onnx_function(x: jax.Array, function_type: str, *, donate_input: bool = False) -> jax.Array:
    """Pallas equivalent of OnnxFunction(function_type)(x)."""
    fn = _JNP_FUNCTION_FROM_ONNX_TYPE[function_type]
    orig_shape = x.shape
    in_dtype = jnp.dtype(x.dtype)

    is_trans = function_type in _TRANSCENDENTAL_OPS
    promote = is_trans and not jnp.issubdtype(in_dtype, jnp.floating)
    compute_dtype = jnp.float32 if promote else None
    out_dtype = jnp.dtype(jnp.float32) if promote else in_dtype

    n = 1
    for d in orig_shape:
        n *= d
    if n == 0:
        return jnp.zeros(orig_shape, dtype=out_dtype)

    num_tcs, target_bytes = _chip_hints()
    in_itemsize = in_dtype.itemsize
    out_itemsize = out_dtype.itemsize
    # Alignment follows the most tightly packed dtype; VMEM sizing is conservative (max).
    sub = _SUBLANES * max(1, 4 // min(in_itemsize, out_itemsize))
    target_rows = max(sub, (target_bytes // (_LANES * max(in_itemsize, out_itemsize))) // sub * sub)

    cost = pl.CostEstimate(
        flops=0 if is_trans else n,
        transcendentals=n if is_trans else 0,
        bytes_accessed=n * (in_itemsize + out_itemsize),
    )
    kernel = functools.partial(_unary_kernel, fn=fn, compute_dtype=compute_dtype)
    # Donation is only safe when the pallas operand and result match exactly.
    aliases = {0: 0} if (donate_input and out_dtype == in_dtype) else {}
    params = pltpu.CompilerParams(dimension_semantics=("parallel",))

    flat = x.reshape(-1)  # zero-copy bitcast reshape

    if n % _LANES == 0:
        # Fast path: lane-dense (rows, 128) slab, zero-copy reshape both ways.
        rows = n // _LANES
        slab = flat.reshape(rows, _LANES)
        block_rows = _choose_block_rows(rows, sub, target_rows, num_tcs)
        out = pl.pallas_call(
            kernel,
            out_shape=jax.ShapeDtypeStruct((rows, _LANES), out_dtype),
            grid=(pl.cdiv(rows, block_rows),),
            in_specs=[pl.BlockSpec((block_rows, _LANES), lambda i: (i, 0))],
            out_specs=pl.BlockSpec((block_rows, _LANES), lambda i: (i, 0)),
            compiler_params=params,
            cost_estimate=cost,
            input_output_aliases=aliases,
        )(slab)
        return out.reshape(orig_shape)

    # Ragged path: process the flat 1-D array directly. The final partial block
    # is masked by the pipeline, so there is no jnp.pad and no output slice —
    # HBM traffic stays at ~2n bytes. (OOB lanes of the last block may compute
    # on garbage; the masked store discards them — harmless on TPU.)
    block_elems = _choose_block_elems(n, sub * _LANES, target_rows * _LANES)
    out = pl.pallas_call(
        kernel,
        out_shape=jax.ShapeDtypeStruct((n,), out_dtype),
        grid=(pl.cdiv(n, block_elems),),
        in_specs=[pl.BlockSpec((block_elems,), lambda i: (i,))],
        out_specs=pl.BlockSpec((block_elems,), lambda i: (i,)),
        compiler_params=params,
        cost_estimate=cost,
        input_output_aliases=aliases,
    )(flat)
    return out.reshape(orig_shape)


if __name__ == "__main__":
    key = jax.random.PRNGKey(0)
    # NCHW input, small shapes: batch=2, channels=4, spatial=16x16.
    x = jax.random.normal(key, (2, 4, 16, 16), dtype=jnp.float32)

    # Ops that definitely lower on TPU Mosaic; Log gets a strictly-positive input.
    test_ops = ["Abs", "Exp", "Sign", "Sin", "Cos", "Tanh", "Tan", "Log"]
    ok = True
    for op in test_ops:
        inp = jnp.abs(x) + 0.5 if op == "Log" else x
        got = jax.block_until_ready(onnx_function(inp, op))
        want = _JNP_FUNCTION_FROM_ONNX_TYPE[op](inp)
        if got.shape != inp.shape or got.dtype != inp.dtype:
            ok = False
            print(f"{op}: shape/dtype mismatch")
        elif not bool(jnp.allclose(got, want, atol=1e-5, rtol=1e-5)):
            ok = False
            print(f"{op}: value mismatch")

    # Ragged (non-lane-aligned) shape exercises the masked 1-D path (no pad/slice).
    xr = jax.random.normal(jax.random.PRNGKey(1), (3, 5, 7), dtype=jnp.float32)
    got_r = jax.block_until_ready(onnx_function(xr, "Exp"))
    if got_r.shape != xr.shape or not bool(
        jnp.allclose(got_r, jnp.exp(xr), atol=1e-5, rtol=1e-5)
    ):
        ok = False
        print("ragged Exp: mismatch")

    # bf16 exercises the 16-row packed-sublane block path.
    xb = x.astype(jnp.bfloat16)
    got_b = jax.block_until_ready(onnx_function(xb, "Tanh"))
    want_b = jnp.tanh(xb)
    if got_b.dtype != jnp.bfloat16 or not bool(
        jnp.allclose(
            got_b.astype(jnp.float32), want_b.astype(jnp.float32), atol=2e-2, rtol=2e-2
        )
    ):
        ok = False
        print("bf16 Tanh: mismatch")

    # int32 -> transcendental exercises the in-kernel int->float32 promotion path.
    xi = jax.random.randint(
        jax.random.PRNGKey(2), (2, 4, 16, 16), minval=-3, maxval=4, dtype=jnp.int32
    )
    got_i = jax.block_until_ready(onnx_function(xi, "Exp"))
    want_i = jnp.exp(xi.astype(jnp.float32))
    if got_i.dtype != jnp.float32 or not bool(
        jnp.allclose(got_i, want_i, atol=1e-4, rtol=1e-5)
    ):
        ok = False
        print("int32 Exp: mismatch")

    # Abs on int32 stays int32 (no promotion).
    got_a = jax.block_until_ready(onnx_function(xi, "Abs"))
    if got_a.dtype != jnp.int32 or not bool(jnp.array_equal(got_a, jnp.abs(xi))):
        ok = False
        print("int32 Abs: mismatch")

    if ok:
        print("KERNEL_OK")
</pallas_src>

<mosaic_0001>
module attributes {stable_mosaic.version = 11 : i64} {
  func.func @_unary_kernel(%arg0: i32, %arg1: memref<16x128xf32, #tpu.memory_space<vmem>>, %arg2: memref<16x128xf32, #tpu.memory_space<vmem>>) attributes {dimension_semantics = [#tpu.dimension_semantics<parallel>], iteration_bounds = array<i64: 1>, scalar_prefetch = 0 : i64, scratch_operands = 0 : i64, tpu.core_type = #tpu.core_type<tc>, window_params = [{transform_indices = @transform_0, window_bounds = array<i64: 16, 128>}, {transform_indices = @transform_1, window_bounds = array<i64: 16, 128>}]} {
    %c0 = arith.constant 0 : index
    %c0_0 = arith.constant 0 : index
    %0 = vector.load %arg1[%c0, %c0_0] : memref<16x128xf32, #tpu.memory_space<vmem>>, vector<16x128xf32>
    %1 = math.absf %0 : vector<16x128xf32>
    %c0_1 = arith.constant 0 : index
    %c0_2 = arith.constant 0 : index
    %2 = vector.load %arg2[%c0_1, %c0_2] : memref<16x128xf32, #tpu.memory_space<vmem>>, vector<16x128xf32>
    tpu.vector_store %arg2[%c0_1, %c0_2], %1 {strides = array<i32>} : memref<16x128xf32, #tpu.memory_space<vmem>>, vector<16x128xf32>,
    return
  }
  func.func @transform_0(%arg0: i32) -> (i32, i32) {
    %c0_i32 = arith.constant 0 : i32
    %c0_i32_0 = arith.constant 0 : i32
    return %arg0, %c0_i32 : i32, i32
  }
  func.func @transform_1(%arg0: i32) -> (i32, i32) {
    %c0_i32 = arith.constant 0 : i32
    %c0_i32_0 = arith.constant 0 : i32
    return %arg0, %c0_i32 : i32, i32
  }
}

</mosaic_0001>

<llo_original>
// kernel: tpu_custom_call.1
$region0: #{tpu_custom_call.1}
  #allocation0 [shape = 'u32[]', space=smem, size = 0x4, offset = 0x4, fixed_abs, tag = 'smem constant byte address 0x4 - core index']
  #allocation1 [shape = 'u32[144,128]{1,0:T(1,128)}', space=vmem, size = 0x12000, scoped, tag = 'internal scratch']
  %s0 = inlined_call_operand.hbm [shape: f32[16,128], index: 0, kind: input, shape index: {}]
  %s1 = inlined_call_operand.hbm [shape: f32[16,128], index: 1, kind: output, shape index: {}]
  %s2 = sld [smem:[#allocation0]]
  $region18: #{tpu_custom_call.1} parent=0
    _
  %s4 = ssub.s32 1, %s2
  %s5 = scalar_select 0, %s4, %s2
  $region1: #{tpu_custom_call.1} parent=0
    #allocation2 [shape = 'u8[8192]{0}', space=vmem, size = 0x2000, scoped, tag = 'input window, operand 0, single buffered']
    #allocation3 [shape = 's32[1]{0}', space=sflag, size = 0x4, scoped, tag = 'scoped memory for tpu_custom_call.1']
    #allocation4 [shape = 's32[1]{0}', space=sflag, size = 0x4, scoped, tag = 'scoped memory for tpu_custom_call.1']
    #allocation5 [shape = 'u8[8192]{0}', space=vmem, size = 0x2000, scoped, tag = 'output window, operand 0, single buffered']
    %6 = vsyncpa [#allocation3], 0
    %7 = vsyncpa [#allocation4], 0
    // Predicated region
    $region2: #{tpu_custom_call.1} parent=1 // pred_check
      _
    $region3: #{tpu_custom_call.1} parent=1 // pred_check_branch
      %9 = sbr.rel (0) target = $region5
    $region4: #{tpu_custom_call.1} parent=1 // pred_region
      %s11 = ssub.s32 256, 256
      %12 = vsyncadd [#allocation3], %s11
      %s13 = sshll.u32 [#allocation2], 4
      %s14 = int_to_ptr.vmem [resolvable:$true] %s13
      %19 = dma.hbm_to_vmem [thread:$0]  %s0, 256, %s14, [#allocation3], 128, 128, 8
    $region5: #{tpu_custom_call.1} parent=1 // pred_fallthru
      _
    // Predicated region
    $region6: #{tpu_custom_call.1} parent=1 // pred_check
      _
    $region7: #{tpu_custom_call.1} parent=1 // pred_check_branch
      %21 = sbr.rel (0) target = $region9
    $region8: #{tpu_custom_call.1} parent=1 // pred_region
      %22 = dma.done [#allocation3], 256
    $region9: #{tpu_custom_call.1} parent=1 // pred_fallthru
      _
    %v23 = vld [vmem:[#allocation2] sm:$0xff]
    %v24 = vld [vmem:[#allocation2 + $0x8] sm:$0xff]
    %v25 = vand.u32 2147483647, %v23
    %v26 = vand.u32 2147483647, %v24
    %27 = vst [vmem:[#allocation5] sm:$0xff] %v25
    %28 = vst [vmem:[#allocation5 + $0x8] sm:$0xff] %v26
    // Predicated region
    $region10: #{tpu_custom_call.1} parent=1 // pred_check
      _
    $region11: #{tpu_custom_call.1} parent=1 // pred_check_branch
      %30 = sbr.rel (0) target = $region13
    $region12: #{tpu_custom_call.1} parent=1 // pred_region
      %s32 = ssub.s32 256, 256
      %33 = vsyncadd [#allocation4], %s32
      %s34 = sshll.u32 [#allocation5], 4
      %s35 = int_to_ptr.vmem [resolvable:$true] %s34
      %40 = dma.vmem_to_hbm [thread:$0]  %s35, 256, %s1, [#allocation4], 128, 128, 8
    $region13: #{tpu_custom_call.1} parent=1 // pred_fallthru
      _
    // Predicated region
    $region14: #{tpu_custom_call.1} parent=1 // pred_check
      _
    $region15: #{tpu_custom_call.1} parent=1 // pred_check_branch
      %42 = sbr.rel (0) target = $region17
    $region16: #{tpu_custom_call.1} parent=1 // pred_region
      %43 = dma.done [#allocation4], 256
    $region17: #{tpu_custom_call.1} parent=1 // pred_fallthru
      _
    %44 = vsyncpa [#allocation3], 1
    %45 = vsyncpa [#allocation4], 1

</llo_original>
